<compile_context>
chip_gen: v5e
topology: v5e:2x2
jax: 0.10.0
libtpu: 0.0.40
codegen_flags: <defaults>
</compile_context>

<pallas_src>
import functools

import jax
import jax.numpy as jnp
from jax.experimental import pallas as pl
from jax.experimental.pallas import tpu as pltpu

PAD_IDX = 0
LN_EPS = 1e-5
_MAX_TILE_ROWS = 2048


# ---------------------------------------------------------------------------
# Kernels
# ---------------------------------------------------------------------------
def _ln_and_predict(h, wp_ref, bp_ref, o_ref):
    # LayerNorm statistics in f32; gamma/beta already folded into wp/bp.
    mean = jnp.mean(h, axis=-1, keepdims=True)
    centered = h - mean
    var = jnp.mean(centered * centered, axis=-1, keepdims=True)
    hn = centered * jax.lax.rsqrt(var + LN_EPS)
    logits = jnp.dot(hn.astype(jnp.bfloat16), wp_ref[...],
                     preferred_element_type=jnp.float32)
    o_ref[...] = (logits + bp_ref[...]).astype(o_ref.dtype)


def dec_head_kernel_possplit(idx_ref, emb_ref, pos_ref, wp_ref, bp_ref, o_ref,
                             *, rows_per_seq):
    # idx_ref: (tm, 1) int32 token ids.
    # emb_ref: (V, m_dim) bf16  = emb_table @ W_fc0[:w_dim]   (resident)
    # pos_ref: (L, m_dim) f32   = positions @ W_fc0[w_dim:]   (resident)
    # wp_ref:  (m_dim, V) bf16  = diag(ln_g) @ W_pred
    # bp_ref:  (1, V) f32       = ln_b @ W_pred + b_pred
    tm = idx_ref.shape[0]
    V, m_dim = emb_ref.shape
    cols = jax.lax.broadcasted_iota(jnp.int32, (tm, V), 1)
    one_hot = (cols == idx_ref[:, 0:1]).astype(jnp.bfloat16)   # single-pass build
    h = jnp.dot(one_hot, emb_ref[...], preferred_element_type=jnp.float32)
    # Tile rows are whole sequences (tm % rows_per_seq == 0), so positions cycle
    # every rows_per_seq rows: free reshape + broadcast add of the f32 pos block.
    h = h.reshape(tm // rows_per_seq, rows_per_seq, m_dim) + pos_ref[...]
    h = h.reshape(tm, m_dim)
    _ln_and_predict(h, wp_ref, bp_ref, o_ref)


def dec_head_kernel_twohot(idx_ref, tbl_ref, wp_ref, bp_ref, o_ref):
    # Fallback when L % 8 != 0: (token, V+position) two-hot lookup on the MXU.
    # idx_ref: (tm, 2) int32; tbl_ref: (V+num_p, m_dim) bf16 fused table.
    tm = idx_ref.shape[0]
    n_tbl = tbl_ref.shape[0]
    cols = jax.lax.broadcasted_iota(jnp.int32, (tm, n_tbl), 1)
    sel = (cols == idx_ref[:, 0:1]) | (cols == idx_ref[:, 1:2])
    h = jnp.dot(sel.astype(jnp.bfloat16), tbl_ref[...],
                preferred_element_type=jnp.float32)
    _ln_and_predict(h, wp_ref, bp_ref, o_ref)


# ---------------------------------------------------------------------------
# Host-side one-time parameter folds
# ---------------------------------------------------------------------------
def prepare_dec_head_params(params):
    """Fold concat+fc0 and the LayerNorm affine into small resident tables.
    Call once per parameter set (independent of batch / sequence length)."""
    emb, pos_w, w_fc0 = params["emb"], params["pos_w"], params["w_fc0"]
    ln_g, ln_b = params["ln_g"], params["ln_b"]
    w_pred, b_pred = params["w_pred"], params["b_pred"]
    V, w_dim = emb.shape
    # concat([emb, pos], -1) @ W_fc0 == emb @ W_fc0[:w_dim] + pos @ W_fc0[w_dim:]
    emb_fc0 = emb @ w_fc0[:w_dim]                                  # (V, m_dim)
    pos_fc0 = jnp.transpose(pos_w, (1, 0)) @ w_fc0[w_dim:]         # (num_p, m_dim)
    # (hn * g + b) @ W + bp == hn @ (g[:,None] * W) + (b @ W + bp)
    w_pred_eff = (w_pred * ln_g[0][:, None]).astype(jnp.bfloat16)  # (m_dim, V)
    b_pred_eff = (b_pred + ln_b @ w_pred).astype(jnp.float32)      # (1, V)
    return {
        "emb_fc0": emb_fc0.astype(jnp.bfloat16),                   # (V, m_dim)
        "pos_fc0": pos_fc0.astype(jnp.float32),                    # (num_p, m_dim)
        "table": jnp.concatenate([emb_fc0, pos_fc0],
                                 axis=0).astype(jnp.bfloat16),     # (V+num_p, m_dim)
        "w_pred": w_pred_eff,
        "b_pred": b_pred_eff,
    }


def _pick_row_tile(M, unit):
    """Rows per grid step: a multiple of `unit`, <= _MAX_TILE_ROWS (amortizes the
    ~0.35us/step overhead), and >= 2 steps whenever M allows so both v7x
    TensorCores get work under dimension_semantics=('parallel',)."""
    cap = max(unit, (_MAX_TILE_ROWS // unit) * unit)
    n_units = -(-M // unit)
    if n_units <= 1:
        return unit
    n_steps = max(2, -(-(n_units * unit) // cap))
    return (-(-n_units // n_steps)) * unit


# ---------------------------------------------------------------------------
# Forward
# ---------------------------------------------------------------------------
@jax.jit
def mini_tf_dec_head_forward(x_tokens, folded):
    """x_tokens: (B, T) int32 token ids.
    Returns (logits (B, T-1, V) bfloat16, o_seqs (B, T-1) int32)."""
    B, T = x_tokens.shape
    o_seqs = x_tokens[:, 1:]
    i_seqs = x_tokens[:, :-1]
    L = T - 1

    V, m_dim = folded["emb_fc0"].shape
    num_p = folded["pos_fc0"].shape[0]
    if L > num_p:
        raise ValueError(f"sequence length {L} exceeds num_p/max_dec_len={num_p}")
    # NOTE: token ids must lie in [0, V); out-of-range ids silently select a
    # zero embedding row here (torch nn.Embedding would raise).

    M = B * L
    use_pos_split = (L % 8 == 0)          # one-hot K=V=128 path
    unit = L if use_pos_split else 8
    tm = _pick_row_tile(M, unit)
    n_steps = -(-M // tm)
    M_pad = n_steps * tm

    tok_idx = i_seqs.reshape(M, 1).astype(jnp.int32)
    out_bytes = M_pad * V * 2             # bf16 logits writeback

    if use_pos_split:
        idx = tok_idx
        if M_pad > M:
            idx = jnp.concatenate(
                [idx, jnp.full((M_pad - M, 1), PAD_IDX, jnp.int32)], axis=0)
        pos_fc0 = folded["pos_fc0"][:L]                            # (L, m_dim) f32
        in_bytes = (idx.size * 4 + folded["emb_fc0"].size * 2 + pos_fc0.size * 4
                    + folded["w_pred"].size * 2 + folded["b_pred"].size * 4)
        cost = pl.CostEstimate(flops=2 * M_pad * (V * m_dim + m_dim * V),
                               transcendentals=M_pad,
                               bytes_accessed=in_bytes + out_bytes)
        logits2d = pl.pallas_call(
            functools.partial(dec_head_kernel_possplit, rows_per_seq=L),
            out_shape=jax.ShapeDtypeStruct((M_pad, V), jnp.bfloat16),
            grid_spec=pltpu.PrefetchScalarGridSpec(
                num_scalar_prefetch=0,
                grid=(n_steps,),
                in_specs=[
                    pl.BlockSpec((tm, 1), lambda i: (i, 0)),        # token ids
                    pl.BlockSpec((V, m_dim), lambda i: (0, 0)),      # resident emb@fc0
                    pl.BlockSpec((L, m_dim), lambda i: (0, 0)),      # resident pos@fc0
                    pl.BlockSpec((m_dim, V), lambda i: (0, 0)),      # folded predictor
                    pl.BlockSpec((1, V), lambda i: (0, 0)),
                ],
                out_specs=pl.BlockSpec((tm, V), lambda i: (i, 0)),
            ),
            compiler_params=pltpu.CompilerParams(
                dimension_semantics=("parallel",)),
            cost_estimate=cost,
        )(idx, folded["emb_fc0"], pos_fc0, folded["w_pred"], folded["b_pred"])
    else:
        pos_idx = jnp.broadcast_to(
            jnp.arange(L, dtype=jnp.int32)[None, :], (B, L)).reshape(M, 1) + V
        idx = jnp.concatenate([tok_idx, pos_idx], axis=-1)          # (M, 2)
        if M_pad > M:
            pad_rows = jnp.concatenate(
                [jnp.full((M_pad - M, 1), PAD_IDX, jnp.int32),
                 jnp.full((M_pad - M, 1), V, jnp.int32)], axis=-1)
            idx = jnp.concatenate([idx, pad_rows], axis=0)
        table = folded["table"]                                     # (V+num_p, m_dim)
        n_tbl = table.shape[0]
        in_bytes = (idx.size * 4 + table.size * 2
                    + folded["w_pred"].size * 2 + folded["b_pred"].size * 4)
        cost = pl.CostEstimate(flops=2 * M_pad * (n_tbl * m_dim + m_dim * V),
                               transcendentals=M_pad,
                               bytes_accessed=in_bytes + out_bytes)
        logits2d = pl.pallas_call(
            dec_head_kernel_twohot,
            out_shape=jax.ShapeDtypeStruct((M_pad, V), jnp.bfloat16),
            grid_spec=pltpu.PrefetchScalarGridSpec(
                num_scalar_prefetch=0,
                grid=(n_steps,),
                in_specs=[
                    pl.BlockSpec((tm, 2), lambda i: (i, 0)),
                    pl.BlockSpec((n_tbl, m_dim), lambda i: (0, 0)),
                    pl.BlockSpec((m_dim, V), lambda i: (0, 0)),
                    pl.BlockSpec((1, V), lambda i: (0, 0)),
                ],
                out_specs=pl.BlockSpec((tm, V), lambda i: (i, 0)),
            ),
            compiler_params=pltpu.CompilerParams(
                dimension_semantics=("parallel",)),
            cost_estimate=cost,
        )(idx, table, folded["w_pred"], folded["b_pred"])

    logits = logits2d[:M].reshape(B, L, V)
    return logits, o_seqs


# ---------------------------------------------------------------------------
# Parameter construction + pure-JAX reference
# ---------------------------------------------------------------------------
def make_params(key, *, vocab=128, w_dim=32, p_dim=32, num_p=16, m_dim=128):
    ks = jax.random.split(key, 7)
    c_in = w_dim + p_dim  # cat_p=True; c_in != m_dim so fc0 exists (as in the spec)
    emb = 0.02 * jax.random.normal(ks[0], (vocab, w_dim), jnp.float32)
    emb = emb.at[PAD_IDX].set(0.0)  # padding_idx row is zeros in nn.Embedding
    pos_w = 0.02 * jax.random.normal(ks[1], (p_dim, num_p), jnp.float32)
    w_fc0 = 0.05 * jax.random.normal(ks[2], (c_in, m_dim), jnp.float32)
    # Non-trivial LN affine / predictor bias so the host-side folds are exercised.
    ln_g = 1.0 + 0.1 * jax.random.normal(ks[3], (1, m_dim), jnp.float32)
    ln_b = 0.05 * jax.random.normal(ks[4], (1, m_dim), jnp.float32)
    w_pred = 0.05 * jax.random.normal(ks[5], (m_dim, vocab), jnp.float32)
    b_pred = 0.02 * jax.random.normal(ks[6], (1, vocab), jnp.float32)
    return {"emb": emb, "pos_w": pos_w, "w_fc0": w_fc0,
            "ln_g": ln_g, "ln_b": ln_b, "w_pred": w_pred, "b_pred": b_pred}


def reference_forward(x_tokens, params):
    """Pure-JAX f32 reference of the original (un-folded) forward."""
    emb = jnp.take(params["emb"], x_tokens[:, :-1], axis=0)
    B, L, _ = emb.shape
    pos = jnp.transpose(params["pos_w"][:, :L], (1, 0))[None]
    pos = jnp.broadcast_to(pos, (B, L, pos.shape[-1]))
    feats = jnp.concatenate([emb, pos], axis=-1)
    h = feats @ params["w_fc0"]
    mean = h.mean(-1, keepdims=True)
    var = ((h - mean) ** 2).mean(-1, keepdims=True)
    h = (h - mean) * jax.lax.rsqrt(var + LN_EPS)
    h = h * params["ln_g"][0] + params["ln_b"][0]
    return h @ params["w_pred"] + params["b_pred"][0]


if __name__ == "__main__":
    key = jax.random.PRNGKey(0)
    kp, kx1, kx2 = jax.random.split(key, 3)

    VOCAB = 128
    params = make_params(kp, vocab=VOCAB)
    folded = prepare_dec_head_params(params)     # one-time fold (hoisted out of forward)
    folded = jax.block_until_ready(folded)

    def run_and_check(x_tokens):
        B, T = x_tokens.shape
        logits, o_seqs = mini_tf_dec_head_forward(x_tokens, folded)
        logits = jax.block_until_ready(logits)
        assert logits.shape == (B, T - 1, VOCAB) and logits.dtype == jnp.bfloat16
        assert o_seqs.shape == (B, T - 1)
        ref = reference_forward(x_tokens, params)
        lf = logits.astype(jnp.float32)
        # bf16 matmul operands + bf16 logits output -> loosened tolerance vs f32 ref.
        assert jnp.allclose(lf, ref, atol=3e-2, rtol=3e-2), \
            float(jnp.max(jnp.abs(lf - ref)))

    # Path 1: L = 8 (multiple of 8) -> one-hot K=128 kernel + resident f32 pos add.
    x1 = jax.random.randint(kx1, (2, 9), 0, VOCAB, dtype=jnp.int32)
    x1 = x1.at[1, 7].set(PAD_IDX)            # exercise padding_idx row
    run_and_check(x1)

    # Path 2: L = 5 (not a multiple of 8) -> two-hot fallback kernel.
    x2 = jax.random.randint(kx2, (3, 6), 0, VOCAB, dtype=jnp.int32)
    run_and_check(x2)

    # TODO(synk): cfg.num_layer > 0 (MiniTF / MiniTFBlock transformer stack) is
    # not defined in the provided source, so only the encoder-is-None path is
    # implemented.
    print("KERNEL_OK")
</pallas_src>

<mosaic_0001>
module attributes {stable_mosaic.version = 11 : i64} {
  func.func @dec_head_kernel_possplit(%arg0: i32, %arg1: memref<8x1xi32, #tpu.memory_space<vmem>>, %arg2: memref<128x128xbf16, #tpu.memory_space<vmem>>, %arg3: memref<8x128xf32, #tpu.memory_space<vmem>>, %arg4: memref<128x128xbf16, #tpu.memory_space<vmem>>, %arg5: memref<1x128xf32, #tpu.memory_space<vmem>>, %arg6: memref<8x128xbf16, #tpu.memory_space<vmem>>) attributes {dimension_semantics = [#tpu.dimension_semantics<parallel>], iteration_bounds = array<i64: 2>, scalar_prefetch = 0 : i64, scratch_operands = 0 : i64, tpu.core_type = #tpu.core_type<tc>, window_params = [{transform_indices = @transform_0, window_bounds = array<i64: 8, 1>}, {pipeline_mode = #tpu.pipeline_mode<synchronous>, transform_indices = @transform_1, window_bounds = array<i64: 128, 128>}, {pipeline_mode = #tpu.pipeline_mode<synchronous>, transform_indices = @transform_2, window_bounds = array<i64: 8, 128>}, {pipeline_mode = #tpu.pipeline_mode<synchronous>, transform_indices = @transform_3, window_bounds = array<i64: 128, 128>}, {pipeline_mode = #tpu.pipeline_mode<synchronous>, transform_indices = @transform_4, window_bounds = array<i64: 1, 128>}, {transform_indices = @transform_5, window_bounds = array<i64: 8, 128>}]} {
    %0 = tpu.iota {dimensions = array<i32: 1>} : vector<8x128xi32>
    %c0 = arith.constant 0 : index
    %c0_0 = arith.constant 0 : index
    %1 = vector.load %arg1[%c0, %c0_0] : memref<8x1xi32, #tpu.memory_space<vmem>>, vector<8x1xi32>
    %2 = vector.broadcast %1 : vector<8x1xi32> to vector<8x128xi32>
    %3 = arith.cmpi eq, %0, %2 : vector<8x128xi32>
    %4 = arith.extui %3 : vector<8x128xi1> to vector<8x128xi32>
    %5 = arith.sitofp %4 : vector<8x128xi32> to vector<8x128xf32>
    %6 = arith.truncf %5 : vector<8x128xf32> to vector<8x128xbf16>
    %c0_1 = arith.constant 0 : index
    %c0_2 = arith.constant 0 : index
    %7 = vector.load %arg2[%c0_1, %c0_2] : memref<128x128xbf16, #tpu.memory_space<vmem>>, vector<128x128xbf16>
    %cst = arith.constant dense<0.000000e+00> : vector<8x128xf32>
    %8 = tpu.matmul %6, %7, %cst {dimension_numbers = #tpu.dot_dimension_numbers<[1], [0], [0], [1], [0, 0, 1, 1], [], []>} : vector<8x128xbf16>, vector<128x128xbf16>, vector<8x128xf32> -> vector<8x128xf32>
    %9 = vector.shape_cast %8 : vector<8x128xf32> to vector<1x8x128xf32>
    %c0_3 = arith.constant 0 : index
    %c0_4 = arith.constant 0 : index
    %10 = vector.load %arg3[%c0_3, %c0_4] : memref<8x128xf32, #tpu.memory_space<vmem>>, vector<8x128xf32>
    %11 = vector.shape_cast %10 : vector<8x128xf32> to vector<1x8x128xf32>
    %12 = arith.addf %9, %11 : vector<1x8x128xf32>
    %13 = vector.shape_cast %12 : vector<1x8x128xf32> to vector<8x128xf32>
    %cst_5 = arith.constant dense<0.000000e+00> : vector<8xf32>
    %14 = vector.multi_reduction <add>, %13, %cst_5 [1] : vector<8x128xf32> to vector<8xf32>
    %15 = vector.shape_cast %14 : vector<8xf32> to vector<8x1xf32>
    %cst_6 = arith.constant 1.280000e+02 : f32
    %16 = vector.broadcast %cst_6 : f32 to vector<8x1xf32>
    %17 = arith.divf %15, %16 : vector<8x1xf32>
    %18 = vector.broadcast %17 : vector<8x1xf32> to vector<8x128xf32>
    %19 = arith.subf %13, %18 : vector<8x128xf32>
    %20 = arith.mulf %19, %19 : vector<8x128xf32>
    %cst_7 = arith.constant dense<0.000000e+00> : vector<8xf32>
    %21 = vector.multi_reduction <add>, %20, %cst_7 [1] : vector<8x128xf32> to vector<8xf32>
    %22 = vector.shape_cast %21 : vector<8xf32> to vector<8x1xf32>
    %cst_8 = arith.constant 1.280000e+02 : f32
    %23 = vector.broadcast %cst_8 : f32 to vector<8x1xf32>
    %24 = arith.divf %22, %23 : vector<8x1xf32>
    %cst_9 = arith.constant 9.99999974E-6 : f32
    %25 = vector.broadcast %cst_9 : f32 to vector<8x1xf32>
    %26 = arith.addf %24, %25 : vector<8x1xf32>
    %27 = math.rsqrt %26 : vector<8x1xf32>
    %28 = vector.broadcast %27 : vector<8x1xf32> to vector<8x128xf32>
    %29 = arith.mulf %19, %28 : vector<8x128xf32>
    %30 = arith.truncf %29 : vector<8x128xf32> to vector<8x128xbf16>
    %c0_10 = arith.constant 0 : index
    %c0_11 = arith.constant 0 : index
    %31 = vector.load %arg4[%c0_10, %c0_11] : memref<128x128xbf16, #tpu.memory_space<vmem>>, vector<128x128xbf16>
    %cst_12 = arith.constant dense<0.000000e+00> : vector<8x128xf32>
    %32 = tpu.matmul %30, %31, %cst_12 {dimension_numbers = #tpu.dot_dimension_numbers<[1], [0], [0], [1], [0, 0, 1, 1], [], []>} : vector<8x128xbf16>, vector<128x128xbf16>, vector<8x128xf32> -> vector<8x128xf32>
    %c0_13 = arith.constant 0 : index
    %c0_14 = arith.constant 0 : index
    %33 = vector.load %arg5[%c0_13, %c0_14] : memref<1x128xf32, #tpu.memory_space<vmem>>, vector<1x128xf32>
    %34 = vector.broadcast %33 : vector<1x128xf32> to vector<8x128xf32>
    %35 = arith.addf %32, %34 : vector<8x128xf32>
    %36 = arith.truncf %35 : vector<8x128xf32> to vector<8x128xbf16>
    %c0_15 = arith.constant 0 : index
    %c0_16 = arith.constant 0 : index
    %37 = vector.load %arg6[%c0_15, %c0_16] : memref<8x128xbf16, #tpu.memory_space<vmem>>, vector<8x128xbf16>
    tpu.vector_store %arg6[%c0_15, %c0_16], %36 {strides = array<i32>} : memref<8x128xbf16, #tpu.memory_space<vmem>>, vector<8x128xbf16>,
    return
  }
  func.func @transform_0(%arg0: i32) -> (i32, i32) {
    %c0_i32 = arith.constant 0 : i32
    %c0_i32_0 = arith.constant 0 : i32
    return %arg0, %c0_i32 : i32, i32
  }
  func.func @transform_1(%arg0: i32) -> (i32, i32) {
    %c0_i32 = arith.constant 0 : i32
    %c0_i32_0 = arith.constant 0 : i32
    %c0_i32_1 = arith.constant 0 : i32
    return %c0_i32, %c0_i32_0 : i32, i32
  }
  func.func @transform_2(%arg0: i32) -> (i32, i32) {
    %c0_i32 = arith.constant 0 : i32
    %c0_i32_0 = arith.constant 0 : i32
    %c0_i32_1 = arith.constant 0 : i32
    return %c0_i32, %c0_i32_0 : i32, i32
  }
  func.func @transform_3(%arg0: i32) -> (i32, i32) {
    %c0_i32 = arith.constant 0 : i32
    %c0_i32_0 = arith.constant 0 : i32
    %c0_i32_1 = arith.constant 0 : i32
    return %c0_i32, %c0_i32_0 : i32, i32
  }
  func.func @transform_4(%arg0: i32) -> (i32, i32) {
    %c0_i32 = arith.constant 0 : i32
    %c0_i32_0 = arith.constant 0 : i32
    %c0_i32_1 = arith.constant 0 : i32
    return %c0_i32, %c0_i32_0 : i32, i32
  }
  func.func @transform_5(%arg0: i32) -> (i32, i32) {
    %c0_i32 = arith.constant 0 : i32
    %c0_i32_0 = arith.constant 0 : i32
    return %arg0, %c0_i32 : i32, i32
  }
}

</mosaic_0001>

<llo_original>
// kernel: mini_tf_dec_head_forward.1
$region0: #{mini_tf_dec_head_forward.1}
  #allocation0 [shape = 'u32[]', space=smem, size = 0x4, offset = 0x4, fixed_abs, tag = 'smem constant byte address 0x4 - core index']
  #allocation1 [shape = 'u32[72,128]{1,0:T(1,128)}', space=vmem, size = 0x9000, scoped, tag = 'internal scratch']
  %s0 = inlined_call_operand.vmem [shape: s32[16,1], index: 0, kind: input, shape index: {}]
  %s1 = inlined_call_operand.hbm [shape: bf16[128,128], index: 1, kind: input, shape index: {}]
  %s2 = inlined_call_operand.vmem [shape: f32[8,128], index: 2, kind: input, shape index: {}]
  %s3 = inlined_call_operand.hbm [shape: bf16[128,128], index: 3, kind: input, shape index: {}]
  %s4 = inlined_call_operand.vmem [shape: f32[1,128], index: 4, kind: input, shape index: {}]
  %s5 = inlined_call_operand.hbm [shape: bf16[16,128], index: 5, kind: output, shape index: {}]
  %s6 = sld [smem:[#allocation0]]
  $region61: #{mini_tf_dec_head_forward.1} parent=0
    _
  %s8 = ssub.s32 1, %s6
  %s9 = scalar_select 0, %s8, %s6
  $region1: #{mini_tf_dec_head_forward.1} parent=0
    #allocation2 [shape = 'u8[32768]{0}', space=vmem, size = 0x8000, scoped, tag = 'input window, operand 1, single buffered']
    #allocation3 [shape = 's32[2]{0}', space=sflag, size = 0x8, scoped, tag = 'scoped memory for mini_tf_dec_head_forward.1']
    #allocation4 [shape = 's32[2]{0}', space=sflag, size = 0x8, scoped, tag = 'scoped memory for mini_tf_dec_head_forward.1']
    #allocation5 [shape = 'u8[32768]{0}', space=vmem, size = 0x8000, scoped, tag = 'input window, operand 3, single buffered']
    #allocation6 [shape = 's32[1]{0}', space=sflag, size = 0x4, scoped, tag = 'scoped memory for mini_tf_dec_head_forward.1']
    #allocation7 [shape = 'u8[4096]{0}', space=vmem, size = 0x1000, scoped, tag = 'output window, operand 0']
    %10 = vsyncpa [#allocation3], 0
    %11 = vsyncpa [#allocation6], 0
    %12 = vsyncpa [#allocation4], 0
    %s13 = scalar_lea.sflag [#allocation4], 1
    %14 = vsyncpa %s13, 0
    loop: start=0, step=1, limit=4
    $region2: #{mini_tf_dec_head_forward.1} parent=1 // loop_pre_header
      _
    $region3: #{mini_tf_dec_head_forward.1} parent=1 // loop_header
      %s16 = sphi 0, %s20
      %p17 = scmp.ge.s32.totalorder %s16, 4
      %s26 = sphi 0, %s28
      %s29 = sphi 0, %s26
      %s30 = sphi 0, %s29
      %s46 = sphi 0, %s30
      %s50 = sphi 0, %s50
      %s52 = sphi 0, %s50
      %s53 = sphi 0, %s52
      %s67 = sphi 0, %s53
      %s71 = sphi 0, %s71
      %s73 = sphi 0, %s71
      %s74 = sphi 0, %s73
      %s88 = sphi 0, %s74
      %s92 = sphi 0, %s92
      %s94 = sphi 0, %s92
      %s95 = sphi 0, %s94
      %s109 = sphi 0, %s95
      %s113 = sphi 0, %s113
      %s115 = sphi 0, %s113
      %s116 = sphi 0, %s115
      %s130 = sphi 0, %s116
      %s136 = sphi 0, %s138
      %s139 = sphi 0, %s136
      %s140 = sphi 0, %s139
      %s156 = sphi 0, %s140
    $region4: #{mini_tf_dec_head_forward.1} parent=1 // loop_header_branch
      %19 = sbr.rel (%p17) target = $region8
    $region5: #{mini_tf_dec_head_forward.1} parent=1 // loop_body
      %s21 = ssub.s32 %s16, 1
      %s22 = ssub.s32 %s16, 2
      %s23 = sadd.s32 %s16, 1
      %s24 = ssub.s32 %s16, %s23
      %p25 = scmp.eq.s32.totalorder %s24, 0
      %s27 = sadd.s32 %s26, 1
      %s28 = scalar_select %p25, %s26, %s27
      %p31 = pneg %p25
      %p32 = scmp.eq.s32.totalorder %s16, 1
      %p33 = por %p31, %p32
      %p34 = scmp.ne.s32.totalorder %s26, %s29
      %p35 = scmp.eq.s32.totalorder %s16, 0
      %p36 = por %p34, %p35
      %p37 = scmp.ne.s32.totalorder %s26, %s29
      %p38 = scmp.eq.s32.totalorder %s21, 1
      %p39 = por %p37, %p38
      %p40 = scmp.ne.s32.totalorder %s29, %s30
      %p41 = scmp.eq.s32.totalorder %s21, 0
      %p42 = por %p40, %p41
      %p43 = scmp.ne.s32.totalorder %s29, %s30
      %p44 = scmp.eq.s32.totalorder %s22, 1
      %p45 = por %p43, %p44
      %p47 = scmp.ne.s32.totalorder %s30, %s46
      %p48 = scmp.eq.s32.totalorder %s22, 0
      %p49 = por %p47, %p48
      %s51 = sadd.s32 %s50, 1
      %p54 = scmp.eq.s32.totalorder %s16, 1
      %p55 = scmp.ne.s32.totalorder %s50, %s52
      %p56 = scmp.eq.s32.totalorder %s16, 0
      %p57 = por %p55, %p56
      %p58 = scmp.ne.s32.totalorder %s50, %s52
      %p59 = scmp.eq.s32.totalorder %s21, 1
      %p60 = por %p58, %p59
      %p61 = scmp.ne.s32.totalorder %s52, %s53
      %p62 = scmp.eq.s32.totalorder %s21, 0
      %p63 = por %p61, %p62
      %p64 = scmp.ne.s32.totalorder %s52, %s53
      %p65 = scmp.eq.s32.totalorder %s22, 1
      %p66 = por %p64, %p65
      %p68 = scmp.ne.s32.totalorder %s53, %s67
      %p69 = scmp.eq.s32.totalorder %s22, 0
      %p70 = por %p68, %p69
      %s72 = sadd.s32 %s71, 1
      %p75 = scmp.eq.s32.totalorder %s16, 1
      %p76 = scmp.ne.s32.totalorder %s71, %s73
      %p77 = scmp.eq.s32.totalorder %s16, 0
      %p78 = por %p76, %p77
      %p79 = scmp.ne.s32.totalorder %s71, %s73
      %p80 = scmp.eq.s32.totalorder %s21, 1
      %p81 = por %p79, %p80
      %p82 = scmp.ne.s32.totalorder %s73, %s74
      %p83 = scmp.eq.s32.totalorder %s21, 0
      %p84 = por %p82, %p83
      %p85 = scmp.ne.s32.totalorder %s73, %s74
      %p86 = scmp.eq.s32.totalorder %s22, 1
      %p87 = por %p85, %p86
      %p89 = scmp.ne.s32.totalorder %s74, %s88
      %p90 = scmp.eq.s32.totalorder %s22, 0
      %p91 = por %p89, %p90
      %s93 = sadd.s32 %s92, 1
      %p96 = scmp.eq.s32.totalorder %s16, 1
      %p97 = scmp.ne.s32.totalorder %s92, %s94
      %p98 = scmp.eq.s32.totalorder %s16, 0
      %p99 = por %p97, %p98
      %p100 = scmp.ne.s32.totalorder %s92, %s94
      %p101 = scmp.eq.s32.totalorder %s21, 1
      %p102 = por %p100, %p101
      %p103 = scmp.ne.s32.totalorder %s94, %s95
      %p104 = scmp.eq.s32.totalorder %s21, 0
      %p105 = por %p103, %p104
      %p106 = scmp.ne.s32.totalorder %s94, %s95
      %p107 = scmp.eq.s32.totalorder %s22, 1
      %p108 = por %p106, %p107
      %p110 = scmp.ne.s32.totalorder %s95, %s109
      %p111 = scmp.eq.s32.totalorder %s22, 0
      %p112 = por %p110, %p111
      %s114 = sadd.s32 %s113, 1
      %p117 = scmp.eq.s32.totalorder %s16, 1
      %p118 = scmp.ne.s32.totalorder %s113, %s115
      %p119 = scmp.eq.s32.totalorder %s16, 0
      %p120 = por %p118, %p119
      %p121 = scmp.ne.s32.totalorder %s113, %s115
      %p122 = scmp.eq.s32.totalorder %s21, 1
      %p123 = por %p121, %p122
      %p124 = scmp.ne.s32.totalorder %s115, %s116
      %p125 = scmp.eq.s32.totalorder %s21, 0
      %p126 = por %p124, %p125
      %p127 = scmp.ne.s32.totalorder %s115, %s116
      %p128 = scmp.eq.s32.totalorder %s22, 1
      %p129 = por %p127, %p128
      %p131 = scmp.ne.s32.totalorder %s116, %s130
      %p132 = scmp.eq.s32.totalorder %s22, 0
      %p133 = por %p131, %p132
      %s134 = ssub.s32 %s16, %s23
      %p135 = scmp.eq.s32.totalorder %s134, 0
      %s137 = sadd.s32 %s136, 1
      %s138 = scalar_select %p135, %s136, %s137
      %p141 = pneg %p135
      %p142 = scmp.eq.s32.totalorder %s16, 1
      %p143 = por %p141, %p142
      %p144 = scmp.ne.s32.totalorder %s136, %s139
      %p145 = scmp.eq.s32.totalorder %s16, 0
      %p146 = por %p144, %p145
      %p147 = scmp.ne.s32.totalorder %s136, %s139
      %p148 = scmp.eq.s32.totalorder %s21, 1
      %p149 = por %p147, %p148
      %p150 = scmp.ne.s32.totalorder %s139, %s140
      %p151 = scmp.eq.s32.totalorder %s21, 0
      %p152 = por %p150, %p151
      %p153 = scmp.ne.s32.totalorder %s139, %s140
      %p154 = scmp.eq.s32.totalorder %s22, 1
      %p155 = por %p153, %p154
      %p157 = scmp.ne.s32.totalorder %s140, %s156
      %p158 = scmp.eq.s32.totalorder %s22, 0
      %p159 = por %p157, %p158
      %p160 = scmp.le.s32.totalorder 1, %s16
      %p161 = scmp.lt.s32.totalorder %s16, 3
      %p162 = pnand %p160, %p161
      %p163 = pneg %p162
      // Predicated region
      $region9: #{mini_tf_dec_head_forward.1} parent=5 // pred_check
        _
      $region10: #{mini_tf_dec_head_forward.1} parent=5 // pred_check_branch
        %165 = sbr.rel (%p162) target = $region12
      $region11: #{mini_tf_dec_head_forward.1} parent=5 // pred_region
        %s166 = ssub.s32 %s16, 1
        // Predicated region
        $region13: #{mini_tf_dec_head_forward.1} parent=11 // pred_check
          %p167 = pneg %p63
        $region14: #{mini_tf_dec_head_forward.1} parent=11 // pred_check_branch
          %169 = sbr.rel (%p167) target = $region16
        $region15: #{mini_tf_dec_head_forward.1} parent=11 // pred_region
          %171 = vsyncadd [#allocation3], 0
          %s172 = sshll.u32 %s1, 4
          %s173 = int_to_ptr.hbm [resolvable:$true] %s172
          %s174 = sshll.u32 [#allocation2], 4
          %s175 = int_to_ptr.vmem [resolvable:$true] %s174
          %180 = dma.hbm_to_vmem [thread:$0]  %s173, 1024, %s175, [#allocation3], 64, 64, 4
        $region16: #{mini_tf_dec_head_forward.1} parent=11 // pred_fallthru
          _
        // Predicated region
        $region17: #{mini_tf_dec_head_forward.1} parent=11 // pred_check
          %p181 = pneg %p84
        $region18: #{mini_tf_dec_head_forward.1} parent=11 // pred_check_branch
          %183 = sbr.rel (%p181) target = $region20
        $region19: #{mini_tf_dec_head_forward.1} parent=11 // pred_region
          _
        $region20: #{mini_tf_dec_head_forward.1} parent=11 // pred_fallthru
          _
        // Predicated region
        $region21: #{mini_tf_dec_head_forward.1} parent=11 // pred_check
          %p184 = pneg %p105
        $region22: #{mini_tf_dec_head_forward.1} parent=11 // pred_check_branch
          %186 = sbr.rel (%p184) target = $region24
        $region23: #{mini_tf_dec_head_forward.1} parent=11 // pred_region
          %188 = vsyncadd [#allocation6], 0
          %s189 = sshll.u32 %s3, 4
          %s190 = int_to_ptr.hbm [resolvable:$true] %s189
          %s191 = sshll.u32 [#allocation5], 4
          %s192 = int_to_ptr.vmem [resolvable:$true] %s191
          %197 = dma.hbm_to_vmem [thread:$0]  %s190, 1024, %s192, [#allocation6], 64, 64, 4
        $region24: #{mini_tf_dec_head_forward.1} parent=11 // pred_fallthru
          _
        // Predicated region
        $region25: #{mini_tf_dec_head_forward.1} parent=11 // pred_check
          %p198 = pneg %p126
        $region26: #{mini_tf_dec_head_forward.1} parent=11 // pred_check_branch
          %200 = sbr.rel (%p198) target = $region28
        $region27: #{mini_tf_dec_head_forward.1} parent=11 // pred_region
          _
        $region28: #{mini_tf_dec_head_forward.1} parent=11 // pred_fallthru
          _
      $region12: #{mini_tf_dec_head_forward.1} parent=5 // pred_fallthru
        _
      %p201 = scmp.lt.s32.totalorder %s16, 2
      // Predicated region
      $region29: #{mini_tf_dec_head_forward.1} parent=5 // pred_check
        %p202 = pneg %p201
      $region30: #{mini_tf_dec_head_forward.1} parent=5 // pred_check_branch
        %204 = sbr.rel (%p202) target = $region32
      $region31: #{mini_tf_dec_head_forward.1} parent=5 // pred_region
        // Predicated region
        $region33: #{mini_tf_dec_head_forward.1} parent=31 // pred_check
          %p205 = pneg %p36
        $region34: #{mini_tf_dec_head_forward.1} parent=31 // pred_check_branch
          %207 = sbr.rel (%p205) target = $region36
        $region35: #{mini_tf_dec_head_forward.1} parent=31 // pred_region
          %p208 = scmp.lt.s32.totalorder %s16, 1
          %s209 = scalar_select %p208, %s16, 1
          %s210 = smul.addr %s209, 8
          %s211 = scalar_lea.vmem %s0, %s210
        $region36: #{mini_tf_dec_head_forward.1} parent=31 // pred_fallthru
          _
      $region32: #{mini_tf_dec_head_forward.1} parent=5 // pred_fallthru
        _
      %p212 = scmp.le.s32.totalorder 1, %s16
      %p213 = scmp.lt.s32.totalorder %s16, 3
      %p214 = pnand %p212, %p213
      %p215 = pneg %p214
      // Predicated region
      $region37: #{mini_tf_dec_head_forward.1} parent=5 // pred_check
        _
      $region38: #{mini_tf_dec_head_forward.1} parent=5 // pred_check_branch
        %217 = sbr.rel (%p214) target = $region40
      $region39: #{mini_tf_dec_head_forward.1} parent=5 // pred_region
        %s218 = ssub.s32 %s16, 1
        // Predicated region
        $region41: #{mini_tf_dec_head_forward.1} parent=39 // pred_check
          %p219 = pneg %p63
        $region42: #{mini_tf_dec_head_forward.1} parent=39 // pred_check_branch
          %221 = sbr.rel (%p219) target = $region44
        $region43: #{mini_tf_dec_head_forward.1} parent=39 // pred_region
          %223 = dma.done [#allocation3], 1024
        $region44: #{mini_tf_dec_head_forward.1} parent=39 // pred_fallthru
          _
        // Predicated region
        $region45: #{mini_tf_dec_head_forward.1} parent=39 // pred_check
          %p224 = pneg %p105
        $region46: #{mini_tf_dec_head_forward.1} parent=39 // pred_check_branch
          %226 = sbr.rel (%p224) target = $region48
        $region47: #{mini_tf_dec_head_forward.1} parent=39 // pred_region
          %228 = dma.done [#allocation6], 1024
        $region48: #{mini_tf_dec_head_forward.1} parent=39 // pred_fallthru
          _
        %p229 = scmp.lt.s32.totalorder %s21, 1
        %s230 = scalar_select %p229, %s21, 1
        %s231 = smul.addr %s230, 8
        %s232 = scalar_lea.vmem %s0, %s231
        %p233 = pneg %p42
        %p234 = pneg %p39
        %p235 = pneg %p63
        %p236 = pneg %p60
        %p237 = pneg %p84
        %p238 = pneg %p81
        %p239 = pneg %p105
        %p240 = pneg %p102
        %p241 = pneg %p126
        %p242 = pneg %p123
        %p243 = pneg %p152
        %p244 = pneg %p149
        %s245 = sand.u32 %s139, 1
        %s246 = scalar_lea.sflag [#allocation4], %s245
        %s247 = sand.u32 %s139, 1
        %s248 = smul.addr %s247, 4
        %s249 = scalar_lea.vmem [#allocation7], %s248
        %p250 = scmp.lt.s32.totalorder %s21, 1
        %s251 = scalar_select %p250, %s21, 1
        %s252 = smul.addr %s251, 8
        %s253 = scalar_lea.vmem %s0, %s252
        %v254 = vlaneseq
        %v255 = vand.u32 %v254, 127
        %v256 = vld [vmem:[%s253] sm:$0xff]
        %257 = vset.pattern.permute.xlu0 0
        %258 = vperm.xlu0 %257, %v256
        %v259 = vpop.permute.xlu0 %258
        %vm260 = vcmp.eq.s32.totalorder %v255, %v259
        %v261 = vsel %vm260, 1, 0
        %v262 = vcvt.s32.f32 %v261
        %v263 = vpack.c.bf16 %v262, %v262
        %v264 = vld [vmem:[#allocation2] sm:$0xf]
        %v265 = vld [vmem:[#allocation2 + $0x4] sm:$0xf]
        %v266 = vld [vmem:[#allocation2 + $0x8] sm:$0xf]
        %v267 = vld [vmem:[#allocation2 + $0xc] sm:$0xf]
        %v268 = vld [vmem:[#allocation2 + $0x10] sm:$0xf]
        %v269 = vld [vmem:[#allocation2 + $0x14] sm:$0xf]
        %v270 = vld [vmem:[#allocation2 + $0x18] sm:$0xf]
        %v271 = vld [vmem:[#allocation2 + $0x1c] sm:$0xf]
        %v272 = vld [vmem:[#allocation2 + $0x20] sm:$0xf]
        %v273 = vld [vmem:[#allocation2 + $0x24] sm:$0xf]
        %v274 = vld [vmem:[#allocation2 + $0x28] sm:$0xf]
        %v275 = vld [vmem:[#allocation2 + $0x2c] sm:$0xf]
        %v276 = vld [vmem:[#allocation2 + $0x30] sm:$0xf]
        %v277 = vld [vmem:[#allocation2 + $0x34] sm:$0xf]
        %v278 = vld [vmem:[#allocation2 + $0x38] sm:$0xf]
        %v279 = vld [vmem:[#allocation2 + $0x3c] sm:$0xf]
        %v296 = vunpack.c.l.b16 %v264
        %v297 = vunpack.c.l.b16 %v265
        %v298 = vunpack.c.l.b16 %v266
        %v299 = vunpack.c.l.b16 %v267
        %v300 = vunpack.c.l.b16 %v268
        %v301 = vunpack.c.l.b16 %v269
        %v302 = vunpack.c.l.b16 %v270
        %v303 = vunpack.c.l.b16 %v271
        %v304 = vunpack.c.l.b16 %v272
        %v305 = vunpack.c.l.b16 %v273
        %v306 = vunpack.c.l.b16 %v274
        %v307 = vunpack.c.l.b16 %v275
        %v308 = vunpack.c.l.b16 %v276
        %v309 = vunpack.c.l.b16 %v277
        %v310 = vunpack.c.l.b16 %v278
        %v311 = vunpack.c.l.b16 %v279
        %v312 = vpack.c.b16 %v297, %v296
        %v313 = vpack.c.b16 %v299, %v298
        %v314 = vpack.c.b16 %v301, %v300
        %v315 = vpack.c.b16 %v303, %v302
        %v316 = vpack.c.b16 %v305, %v304
        %v317 = vpack.c.b16 %v307, %v306
        %v318 = vpack.c.b16 %v309, %v308
        %v319 = vpack.c.b16 %v311, %v310
        %328 = vmatpush.bf16.msra.mxu0 %v319
        %329 = vmatpush.bf16.msra.mxu0 %v318
        %330 = vmatpush.bf16.msra.mxu0 %v317
        %331 = vmatpush.bf16.msra.mxu0 %v316
        %332 = vmatpush.bf16.msra.mxu0 %v315
        %333 = vmatpush.bf16.msra.mxu0 %v314
        %334 = vmatpush.bf16.msra.mxu0 %v313
        %335 = vmatpush.bf16.msra.mxu0 %v312
        %336 = vmatmul.bf16.gmra.mxu0 %v263
        %v337 = vpop.f32.mrf.mxu0
        %v338 = vadd.f32 0.0, %v337
        %v339 = vpop.f32.mrf.mxu0
        %340 = vdwg.mxu0
        %v341 = vld [vmem:[%s2] sm:$0xff]
        %v342 = vadd.f32 %v338, %v341
        %343 = vadd.xlane.f32.xlu0 %v342
        %v344 = vpop.xlane.xlu0 %343
        %v345 = vrcp.pop 128.0
        %v346 = vmul.f32 128.0, %v345
        %v347 = vsub.f32 1.0, %v346
        %v348 = vmul.f32 %v345, %v347
        %v349 = vadd.f32 %v345, %v348
        %vm350 = vweird.f32 %v345
        %v351 = vsel %vm350, %v345, %v349
        %v352 = vmul.f32 %v344, %v351
        %v353 = vsub.f32 %v342, %v352
        %v354 = vmul.f32 %v353, %v353
        %355 = vadd.xlane.f32.xlu0 %v354
        %v356 = vpop.xlane.xlu0 %355
        %v357 = vmul.f32 %v356, %v351
        %v358 = vadd.f32 %v357, 1e-05
        %v359 = vrsqrt.pop %v358
        %v360 = vmul.f32 %v359, %v358
        %v361 = vmul.f32 %v360, %v359
        %v362 = vmul.f32 0.5, %v361
        %v363 = vsub.f32 1.5, %v362
        %v364 = vmul.f32 %v359, %v363
        %vm365 = vweird.f32 %v358
        %vm366 = vweird.f32 %v359
        %vm367 = vmor %vm365, %vm366
        %v368 = vsel %vm367, %v359, %v364
        %v369 = vmul.f32 %v353, %v368
        %v370 = vpack.c.bf16 %v369, %v369
        %v371 = vld [vmem:[#allocation5] sm:$0xf]
        %v372 = vld [vmem:[#allocation5 + $0x4] sm:$0xf]
        %v373 = vld [vmem:[#allocation5 + $0x8] sm:$0xf]
        %v374 = vld [vmem:[#allocation5 + $0xc] sm:$0xf]
        %v375 = vld [vmem:[#allocation5 + $0x10] sm:$0xf]
        %v376 = vld [vmem:[#allocation5 + $0x14] sm:$0xf]
        %v377 = vld [vmem:[#allocation5 + $0x18] sm:$0xf]
        %v378 = vld [vmem:[#allocation5 + $0x1c] sm:$0xf]
        %v379 = vld [vmem:[#allocation5 + $0x20] sm:$0xf]
        %v380 = vld [vmem:[#allocation5 + $0x24] sm:$0xf]
        %v381 = vld [vmem:[#allocation5 + $0x28] sm:$0xf]
        %v382 = vld [vmem:[#allocation5 + $0x2c] sm:$0xf]
        %v383 = vld [vmem:[#allocation5 + $0x30] sm:$0xf]
        %v384 = vld [vmem:[#allocation5 + $0x34] sm:$0xf]
        %v385 = vld [vmem:[#allocation5 + $0x38] sm:$0xf]
        %v386 = vld [vmem:[#allocation5 + $0x3c] sm:$0xf]
        %v387 = vld [vmem:[%s4] sm:$0x1]
        %v389 = vperm.slane %v387, 0
        %v407 = vunpack.c.l.b16 %v371
        %v408 = vunpack.c.l.b16 %v372
        %v409 = vunpack.c.l.b16 %v373
        %v410 = vunpack.c.l.b16 %v374
        %v411 = vunpack.c.l.b16 %v375
        %v412 = vunpack.c.l.b16 %v376
        %v413 = vunpack.c.l.b16 %v377
        %v414 = vunpack.c.l.b16 %v378
        %v415 = vunpack.c.l.b16 %v379
        %v416 = vunpack.c.l.b16 %v380
        %v417 = vunpack.c.l.b16 %v381
        %v418 = vunpack.c.l.b16 %v382
        %v419 = vunpack.c.l.b16 %v383
        %v420 = vunpack.c.l.b16 %v384
        %v421 = vunpack.c.l.b16 %v385
        %v422 = vunpack.c.l.b16 %v386
        %v423 = vpack.c.b16 %v408, %v407
        %v424 = vpack.c.b16 %v410, %v409
        %v425 = vpack.c.b16 %v412, %v411
        %v426 = vpack.c.b16 %v414, %v413
        %v427 = vpack.c.b16 %v416, %v415
        %v428 = vpack.c.b16 %v418, %v417
        %v429 = vpack.c.b16 %v420, %v419
        %v430 = vpack.c.b16 %v422, %v421
        %439 = vmatpush.bf16.msra.mxu0 %v430
        %440 = vmatpush.bf16.msra.mxu0 %v429
        %441 = vmatpush.bf16.msra.mxu0 %v428
        %442 = vmatpush.bf16.msra.mxu0 %v427
        %443 = vmatpush.bf16.msra.mxu0 %v426
        %444 = vmatpush.bf16.msra.mxu0 %v425
        %445 = vmatpush.bf16.msra.mxu0 %v424
        %446 = vmatpush.bf16.msra.mxu0 %v423
        %447 = vmatmul.bf16.gmra.mxu0 %v370
        %v448 = vpop.f32.mrf.mxu0
        %v449 = vadd.f32 %v389, %v448
        %v450 = vpop.f32.mrf.mxu0
        %451 = vdwg.mxu0
        %v452 = vpack.c.bf16 %v449, %v449
        %453 = vst [vmem:[%s249] sm:$0xf] %v452
        %s454 = sand.u32 %s139, 1
        %s455 = scalar_lea.sflag [#allocation4], %s454
        %s456 = sand.u32 %s139, 1
        %s457 = smul.addr %s456, 4
        %s458 = scalar_lea.vmem [#allocation7], %s457
        // Predicated region
        $region49: #{mini_tf_dec_head_forward.1} parent=39 // pred_check
          %p459 = pneg %p149
        $region50: #{mini_tf_dec_head_forward.1} parent=39 // pred_check_branch
          %461 = sbr.rel (%p459) target = $region52
        $region51: #{mini_tf_dec_head_forward.1} parent=39 // pred_region
          %463 = vsyncadd %s455, 0
          %s464 = smul.addr %s21, 4
          %s465 = scalar_lea.hbm %s5, %s464
          %s467 = sshll.u32 %s458, 4
          %s468 = int_to_ptr.vmem [resolvable:$true] %s467
          %s469 = sshll.u32 %s465, 4
          %s470 = int_to_ptr.hbm [resolvable:$true] %s469
          %472 = dma.vmem_to_hbm [thread:$0]  %s468, 64, %s470, %s455
        $region52: #{mini_tf_dec_head_forward.1} parent=39 // pred_fallthru
          _
      $region40: #{mini_tf_dec_head_forward.1} parent=5 // pred_fallthru
        _
      %p473 = scmp.le.s32.totalorder 2, %s16
      // Predicated region
      $region53: #{mini_tf_dec_head_forward.1} parent=5 // pred_check
        %p474 = pneg %p473
      $region54: #{mini_tf_dec_head_forward.1} parent=5 // pred_check_branch
        %476 = sbr.rel (%p474) target = $region56
      $region55: #{mini_tf_dec_head_forward.1} parent=5 // pred_region
        %s477 = ssub.s32 %s16, 2
        // Predicated region
        $region57: #{mini_tf_dec_head_forward.1} parent=55 // pred_check
          %p478 = pneg %p155
        $region58: #{mini_tf_dec_head_forward.1} parent=55 // pred_check_branch
          %480 = sbr.rel (%p478) target = $region60
        $region59: #{mini_tf_dec_head_forward.1} parent=55 // pred_region
          %s481 = sand.u32 %s140, 1
          %s482 = scalar_lea.sflag [#allocation4], %s481
          %s483 = sand.u32 %s140, 1
          %s484 = smul.addr %s483, 4
          %s485 = scalar_lea.vmem [#allocation7], %s484
          %487 = dma.done %s482, 64
        $region60: #{mini_tf_dec_head_forward.1} parent=55 // pred_fallthru
          _
      $region56: #{mini_tf_dec_head_forward.1} parent=5 // pred_fallthru
        _
    $region6: #{mini_tf_dec_head_forward.1} parent=1 // loop_footer
      %s20 = sadd.s32 1, %s16
    $region7: #{mini_tf_dec_head_forward.1} parent=1 // loop_footer_branch
      %15 = sbr.rel target = $region3
    $region8: #{mini_tf_dec_head_forward.1} parent=1 // loop_exit
      _
    %488 = vsyncpa [#allocation3], 1
    %s489 = scalar_lea.sflag [#allocation3], 1
    %490 = vsyncpa %s489, 1
    %491 = vsyncpa [#allocation6], 1
    %492 = vsyncpa [#allocation4], 1
    %s493 = scalar_lea.sflag [#allocation4], 1
    %494 = vsyncpa %s493, 1

</llo_original>
